<compile_context>
chip_gen: v5e
topology: v5e:2x2
jax: 0.10.0
libtpu: 0.0.40
codegen_flags: <defaults>
</compile_context>

<pallas_src>
import functools
import math

import jax
import jax.numpy as jnp
import numpy as np
from jax.experimental import pallas as pl
from jax.experimental.pallas import tpu as pltpu

KERNEL_SIZE = 5
NUM_CHANNELS = [3, 6, 6, 6, 6, 5]
INPUT_DIM = 1

LANE = 128   # TPU lane width
CPAD = 8     # all channel dims padded to one sublane tile


# --------------------------- parameter slab layout ---------------------------

def _build_plan(channels, K, input_dim):
    """Static layout of every (channel-padded) weight/bias in one f32 slab."""
    assert max(channels + [input_dim]) <= CPAD
    plan = {}
    row = 0

    def add(name, r, c):
        nonlocal row
        assert r <= CPAD and c <= LANE
        plan[name] = (row, r, c)
        row += CPAD                      # one 8-row chunk per tensor

    cin = input_dim
    down_flags = []
    for i, cout in enumerate(channels):
        add(f"w1_{i}", CPAD, K * CPAD)
        add(f"b1_{i}", CPAD, 1)
        add(f"w2_{i}", CPAD, K * CPAD)
        add(f"b2_{i}", CPAD, 1)
        down = (cin != cout)
        if down:
            add(f"wd_{i}", CPAD, CPAD)
            add(f"bd_{i}", CPAD, 1)
        down_flags.append(down)
        cin = cout
    add("wr", 1, CPAD)
    add("br", 1, 1)
    return plan, down_flags, row


def _pad2(a, rows, cols):
    r, c = a.shape
    return jnp.zeros((rows, cols), jnp.float32).at[:r, :c].set(a)


def _im2col_pad(w, K):
    # (Cout, Cin, K) conv weight -> channel-padded (CPAD, K*CPAD), tap-major.
    cout, cin, k = w.shape
    assert k == K and cout <= CPAD and cin <= CPAD
    wp = jnp.zeros((CPAD, CPAD, K), jnp.float32).at[:cout, :cin, :].set(w)
    return jnp.transpose(wp, (0, 2, 1)).reshape(CPAD, K * CPAD)


def _pack_params(plan, total_rows, block_params, reg_params, K):
    slab = jnp.zeros((total_rows, LANE), jnp.float32)

    def put(slab, name, a2d):
        r0, r, c = plan[name]
        a2d = a2d.astype(jnp.float32)
        assert a2d.shape == (r, c), (name, a2d.shape, (r, c))
        return slab.at[r0:r0 + r, :c].set(a2d)

    for i, (w1, b1, w2, b2, wd, bd) in enumerate(block_params):
        slab = put(slab, f"w1_{i}", _im2col_pad(w1, K))
        slab = put(slab, f"b1_{i}", _pad2(b1[:, None], CPAD, 1))
        slab = put(slab, f"w2_{i}", _im2col_pad(w2, K))
        slab = put(slab, f"b2_{i}", _pad2(b2[:, None], CPAD, 1))
        if wd is not None:
            slab = put(slab, f"wd_{i}", _pad2(wd, CPAD, CPAD))
            slab = put(slab, f"bd_{i}", _pad2(bd[:, None], CPAD, 1))
    wr, br = reg_params
    slab = put(slab, "wr", _pad2(wr, 1, CPAD))
    slab = put(slab, "br", br[:, None])
    return slab


# ------------------------------ roll convention ------------------------------

@functools.lru_cache(maxsize=None)
def _roll_is_toward_higher_indices() -> bool:
    """Probe pltpu.roll's sign convention once (robust across JAX versions)."""
    def kernel(x_ref, o_ref):
        o_ref[...] = pltpu.roll(x_ref[...], shift=1, axis=1)

    x = jnp.tile(jnp.arange(LANE, dtype=jnp.float32)[None, :], (CPAD, 1))
    y = pl.pallas_call(
        kernel, out_shape=jax.ShapeDtypeStruct((CPAD, LANE), jnp.float32))(x)
    return bool(np.asarray(y)[0, 1] == 0.0)


# ------------------------------- fused kernel --------------------------------

def _make_fused_kernel(*, T, lanes, K, dilations, n_blocks, down_flags, plan,
                       roll_right):
    # Distinct nonzero causal shifts actually used; taps with shift >= T only
    # ever read the causal zero padding and are dropped at trace time.
    shifts = sorted({(K - 1 - k) * d
                     for d in dilations for k in range(K)
                     if 0 < (K - 1 - k) * d < T})

    def kernel(p_ref, x_ref, o_ref):
        # Hoisted per-tile lane-position masks, one per distinct shift.
        pos = jax.lax.broadcasted_iota(jnp.int32, (CPAD, lanes), 1) % T
        masks = {s: pos >= s for s in shifts}

        def getp(name):
            r0, r, c = plan[name]
            return p_ref[r0:r0 + r, :c]          # static, sublane-aligned slice

        def seg_shift(a, shift):
            # Causal right-shift of every length-T segment on the lane axis:
            # one XLU roll over the whole tile + one select.  Data that wraps
            # across segment boundaries lands exactly where the mask writes
            # the causal zeros, so a single global roll is correct.
            if shift == 0:
                return a
            assert 0 < shift < T <= lanes
            amt = shift if roll_right else lanes - shift
            rolled = pltpu.roll(a, shift=amt, axis=1)
            return jnp.where(masks[shift], rolled, 0.0)

        def causal_conv(a, w, b, d):
            # Causal dilated conv as one im2col matmul; a: (CPAD, lanes),
            # w: (CPAD, K*CPAD) tap-major, b: (CPAD, 1).
            pad = (K - 1) * d
            ks = [k for k in range(K) if pad - k * d < T]     # kept taps
            assert ks and ks == list(range(ks[0], K))         # contiguous tail
            if len(ks) > 1:
                slab = jnp.concatenate(
                    [seg_shift(a, pad - k * d) for k in ks], axis=0)
            else:
                slab = seg_shift(a, pad - ks[0] * d)
            w_used = w[:, ks[0] * CPAD:]
            return jnp.dot(w_used, slab,
                           preferred_element_type=jnp.float32) + b

        cur = x_ref[...]                          # (CPAD, lanes)
        for i in range(n_blocks):
            d = dilations[i]
            h = jnp.maximum(
                causal_conv(cur, getp(f"w1_{i}"), getp(f"b1_{i}"), d), 0.0)
            # TODO(synk): nn.Dropout(p=0.2) is identity in eval mode; omitted.
            out = jnp.maximum(
                causal_conv(h, getp(f"w2_{i}"), getp(f"b2_{i}"), d), 0.0)
            if down_flags[i]:
                res = (jnp.dot(getp(f"wd_{i}"), cur,
                               preferred_element_type=jnp.float32)
                       + getp(f"bd_{i}"))
            else:
                res = cur
            cur = jnp.maximum(out + res, 0.0)

        o_ref[...] = (jnp.dot(getp("wr"), cur,
                              preferred_element_type=jnp.float32) + getp("br"))

    return kernel


# ---------------------------------- wrapper ----------------------------------

def _choose_batch_tile(B, T, target_lanes=512):
    # Smallest batch count whose lane width is a multiple of 128, scaled
    # toward ~target_lanes lanes per grid step (without over-padding B).
    g = math.gcd(T, LANE)
    step = LANE // g
    want = max(1, int(round(target_lanes / (step * T))))
    max_mult = pl.cdiv(B, step)
    return step * max(1, min(want, max_mult))


def tcn_forward(x, block_params, reg_params):
    """x: (B, C, T) float32 -> (B, 1, T) float32."""
    B, cin0, T = x.shape
    assert cin0 <= CPAD
    K = KERNEL_SIZE
    dilations = [2 ** i for i in range(len(NUM_CHANNELS))]

    plan, down_flags, total_rows = _build_plan(NUM_CHANNELS, K, cin0)
    p_slab = _pack_params(plan, total_rows, block_params, reg_params, K)

    bt = _choose_batch_tile(B, T)                 # batches per grid step
    grid = pl.cdiv(B, bt)
    b_pad = grid * bt
    lanes = bt * T                                # lane width per tile (%128==0)

    # channels -> sublanes (padded to 8), batch*time -> lanes (fast axis).
    xp = jnp.pad(x.astype(jnp.float32), ((0, b_pad - B), (0, 0), (0, 0)))
    xc = jnp.transpose(xp, (1, 0, 2)).reshape(cin0, b_pad * T)
    xc = jnp.pad(xc, ((0, CPAD - cin0), (0, 0)))

    kernel = _make_fused_kernel(
        T=T, lanes=lanes, K=K, dilations=dilations,
        n_blocks=len(NUM_CHANNELS), down_flags=down_flags, plan=plan,
        roll_right=_roll_is_toward_higher_indices())

    # Advisory cost estimate.
    flops, cin = 0, cin0
    for i, cout in enumerate(NUM_CHANNELS):
        d = dilations[i]
        taps = sum(1 for k in range(K) if (K - 1 - k) * d < T)
        flops += 2 * cout * taps * cin * (b_pad * T)
        flops += 2 * cout * taps * cout * (b_pad * T)
        if down_flags[i]:
            flops += 2 * cout * cin * (b_pad * T)
        cin = cout
    flops += 2 * NUM_CHANNELS[-1] * (b_pad * T)
    bytes_accessed = 4 * (xc.size + b_pad * T + p_slab.size)

    y = pl.pallas_call(
        kernel,
        out_shape=jax.ShapeDtypeStruct((1, b_pad * T), jnp.float32),
        grid_spec=pltpu.PrefetchScalarGridSpec(
            num_scalar_prefetch=0,
            grid=(grid,),
            in_specs=[
                pl.BlockSpec((total_rows, LANE), lambda i: (0, 0)),  # resident
                pl.BlockSpec((CPAD, lanes), lambda i: (0, i)),
            ],
            out_specs=pl.BlockSpec((1, lanes), lambda i: (0, i)),
        ),
        compiler_params=pltpu.CompilerParams(
            dimension_semantics=("parallel",),    # v7x: split batch over 2 TCs
            vmem_limit_bytes=32 * 1024 * 1024,
        ),
        cost_estimate=pl.CostEstimate(
            flops=int(flops), transcendentals=0,
            bytes_accessed=int(bytes_accessed)),
    )(p_slab, xc)

    y = y.reshape(1, b_pad, T)[:, :B, :]          # drop zero-padded batches
    return jnp.transpose(y, (1, 0, 2))            # (B, 1, T)


# -------------------------- deterministic parameters -------------------------

def _weight_norm(v, g):
    # PyTorch weight_norm (dim=0): w = g * v / ||v||, norm over all dims but 0.
    norm = jnp.sqrt(jnp.sum(v * v, axis=(1, 2), keepdims=True))
    return g[:, None, None] * v / norm


def init_params(key):
    block_params = []
    cin = INPUT_DIM
    for cout in NUM_CHANNELS:
        key, k1, k2, k3, k4, k5, k6, k7, k8 = jax.random.split(key, 9)
        v1 = 0.01 * jax.random.normal(k1, (cout, cin, KERNEL_SIZE), jnp.float32)
        g1 = 1.0 + 0.1 * jax.random.normal(k2, (cout,), jnp.float32)
        w1 = _weight_norm(v1, g1)
        b1 = 0.01 * jax.random.normal(k3, (cout,), jnp.float32)

        v2 = 0.01 * jax.random.normal(k4, (cout, cout, KERNEL_SIZE), jnp.float32)
        g2 = 1.0 + 0.1 * jax.random.normal(k5, (cout,), jnp.float32)
        w2 = _weight_norm(v2, g2)
        b2 = 0.01 * jax.random.normal(k6, (cout,), jnp.float32)

        if cin != cout:  # 1x1 downsample conv on the residual path
            wd = 0.01 * jax.random.normal(k7, (cout, cin), jnp.float32)
            bd = 0.01 * jax.random.normal(k8, (cout,), jnp.float32)
        else:
            wd, bd = None, None

        block_params.append((w1, b1, w2, b2, wd, bd))
        cin = cout

    key, kr1, kr2 = jax.random.split(key, 3)
    wr = 0.01 * jax.random.normal(kr1, (1, NUM_CHANNELS[-1]), jnp.float32)
    br = 0.01 * jax.random.normal(kr2, (1,), jnp.float32)
    return block_params, (wr, br)


# ----------------------------- pure-JAX reference ----------------------------

def _ref_block(x, p, K, d):
    w1, b1, w2, b2, wd, bd = p
    pad = (K - 1) * d
    Bb, _, T = x.shape

    def conv(xin, w, b):
        xp = jnp.pad(xin, ((0, 0), (0, 0), (pad, 0)))
        acc = jnp.zeros((Bb, w.shape[0], T), jnp.float32)
        for k in range(K):
            acc = acc + jnp.einsum('oi,bit->bot', w[:, :, k],
                                   xp[:, :, k * d:k * d + T])
        return acc + b[None, :, None]

    h = jax.nn.relu(conv(x, w1, b1))
    out = jax.nn.relu(conv(h, w2, b2))
    res = x if wd is None else (jnp.einsum('oi,bit->bot', wd, x)
                                + bd[None, :, None])
    return jax.nn.relu(out + res)


def ref_forward(x, block_params, reg_params):
    for i, p in enumerate(block_params):
        x = _ref_block(x, p, KERNEL_SIZE, 2 ** i)
    wr, br = reg_params
    return jnp.einsum('oi,bit->bot', wr, x) + br[None, :, None]


# ----------------------------------- main ------------------------------------

if __name__ == "__main__":
    key = jax.random.PRNGKey(0)
    kparam, kx = jax.random.split(key)
    block_params, reg_params = init_params(kparam)

    B, T = 2, 16
    x = jax.random.normal(kx, (B, INPUT_DIM, T), jnp.float32)   # (B, C, T)

    out = jax.block_until_ready(tcn_forward(x, block_params, reg_params))
    assert out.shape == (B, 1, T), out.shape

    ref = ref_forward(x, block_params, reg_params)
    np.testing.assert_allclose(np.asarray(out), np.asarray(ref),
                               rtol=1e-5, atol=1e-5)
    print("KERNEL_OK")
</pallas_src>

<mosaic_0001>
module attributes {stable_mosaic.version = 11 : i64} {
  func.func @kernel(%arg0: memref<8x128xf32, #tpu.memory_space<vmem>>, %arg1: memref<8x128xf32, #tpu.memory_space<vmem>>) attributes {dimension_semantics = [], scalar_prefetch = 0 : i64, scratch_operands = 0 : i64, tpu.core_type = #tpu.core_type<tc>} {
    %c0 = arith.constant 0 : index
    %c0_0 = arith.constant 0 : index
    %0 = vector.load %arg0[%c0, %c0_0] : memref<8x128xf32, #tpu.memory_space<vmem>>, vector<8x128xf32>
    %c1_i32 = arith.constant 1 : i32
    %1 = tpu.dynamic_rotate %0 by %c1_i32 dim 1 : vector<8x128xf32>, i32 -> vector<8x128xf32>
    %c0_1 = arith.constant 0 : index
    %c0_2 = arith.constant 0 : index
    %2 = vector.load %arg1[%c0_1, %c0_2] : memref<8x128xf32, #tpu.memory_space<vmem>>, vector<8x128xf32>
    tpu.vector_store %arg1[%c0_1, %c0_2], %1 {strides = array<i32>} : memref<8x128xf32, #tpu.memory_space<vmem>>, vector<8x128xf32>,
    return
  }
}

</mosaic_0001>

<llo_original>
// kernel: tpu_custom_call.1
$region0: #{tpu_custom_call.1}
  #allocation0 [shape = 'u32[]', space=smem, size = 0x4, offset = 0x4, fixed_abs, tag = 'smem constant byte address 0x4 - core index']
  #allocation1 [shape = 'u32[72,128]{1,0:T(1,128)}', space=vmem, size = 0x9000, scoped, tag = 'internal scratch']
  %s0 = inlined_call_operand.hbm [shape: f32[8,128], index: 0, kind: input, shape index: {}]
  %s1 = inlined_call_operand.hbm [shape: f32[8,128], index: 1, kind: output, shape index: {}]
  %s2 = sld [smem:[#allocation0]]
  $region18: #{tpu_custom_call.1} parent=0
    _
  %s4 = ssub.s32 1, %s2
  %s5 = scalar_select 0, %s4, %s2
  $region1: #{tpu_custom_call.1} parent=0
    #allocation2 [shape = 'u8[4096]{0}', space=vmem, size = 0x1000, scoped, tag = 'input window, operand 0, single buffered']
    #allocation3 [shape = 's32[1]{0}', space=sflag, size = 0x4, scoped, tag = 'scoped memory for tpu_custom_call.1']
    #allocation4 [shape = 's32[1]{0}', space=sflag, size = 0x4, scoped, tag = 'scoped memory for tpu_custom_call.1']
    #allocation5 [shape = 'u8[4096]{0}', space=vmem, size = 0x1000, scoped, tag = 'output window, operand 0, single buffered']
    %6 = vsyncpa [#allocation3], 0
    %7 = vsyncpa [#allocation4], 0
    // Predicated region
    $region2: #{tpu_custom_call.1} parent=1 // pred_check
      _
    $region3: #{tpu_custom_call.1} parent=1 // pred_check_branch
      %9 = sbr.rel (0) target = $region5
    $region4: #{tpu_custom_call.1} parent=1 // pred_region
      %11 = vsyncadd [#allocation3], 0
      %s13 = sshll.u32 %s0, 4
      %s14 = int_to_ptr.hbm [resolvable:$true] %s13
      %s15 = sshll.u32 [#allocation2], 4
      %s16 = int_to_ptr.vmem [resolvable:$true] %s15
      %18 = dma.hbm_to_vmem [thread:$0]  %s14, 128, %s16, [#allocation3]
    $region5: #{tpu_custom_call.1} parent=1 // pred_fallthru
      _
    // Predicated region
    $region6: #{tpu_custom_call.1} parent=1 // pred_check
      _
    $region7: #{tpu_custom_call.1} parent=1 // pred_check_branch
      %20 = sbr.rel (0) target = $region9
    $region8: #{tpu_custom_call.1} parent=1 // pred_region
      %22 = dma.done [#allocation3], 128
    $region9: #{tpu_custom_call.1} parent=1 // pred_fallthru
      _
    %v23 = vld [vmem:[#allocation2] sm:$0xff]
    %24 = vrot.lane.b32.xlu0 %v23, 1
    %v25 = vpop.permute.xlu0 %24
    %26 = vst [vmem:[#allocation5] sm:$0xff] %v25
    // Predicated region
    $region10: #{tpu_custom_call.1} parent=1 // pred_check
      _
    $region11: #{tpu_custom_call.1} parent=1 // pred_check_branch
      %28 = sbr.rel (0) target = $region13
    $region12: #{tpu_custom_call.1} parent=1 // pred_region
      %30 = vsyncadd [#allocation4], 0
      %s32 = sshll.u32 [#allocation5], 4
      %s33 = int_to_ptr.vmem [resolvable:$true] %s32
      %s34 = sshll.u32 %s1, 4
      %s35 = int_to_ptr.hbm [resolvable:$true] %s34
      %37 = dma.vmem_to_hbm [thread:$0]  %s33, 128, %s35, [#allocation4]
    $region13: #{tpu_custom_call.1} parent=1 // pred_fallthru
      _
    // Predicated region
    $region14: #{tpu_custom_call.1} parent=1 // pred_check
      _
    $region15: #{tpu_custom_call.1} parent=1 // pred_check_branch
      %39 = sbr.rel (0) target = $region17
    $region16: #{tpu_custom_call.1} parent=1 // pred_region
      %41 = dma.done [#allocation4], 128
    $region17: #{tpu_custom_call.1} parent=1 // pred_fallthru
      _
    %42 = vsyncpa [#allocation3], 1
    %43 = vsyncpa [#allocation4], 1

</llo_original>
